<compile_context>
chip_gen: v7x
topology: tpu7x:2x2x1
jax: 0.10.0
libtpu: 0.0.40
codegen_flags: <defaults>
</compile_context>

<pallas_src>
import functools

import jax
import jax.numpy as jnp
from jax.experimental import pallas as pl
from jax.experimental.pallas import tpu as pltpu

LN_EPS = 1e-5   # PyTorch nn.LayerNorm default
SUBLANES = 8    # native sublane tile
LANES = 128     # native lane tile


# ----------------------------------------------------------------------------
# Kernel
# ----------------------------------------------------------------------------
def dynamic_pos_bias_kernel(coords_ref, params_ref, out_ref, *,
                            pos_dim: int, residual: bool):
    """coords_ref: (8, n_pad) f32, rows 0-1 = (dh, dw) relative coords.
    params_ref: (8, 128) f32 packed parameter slab (see pack_params).
    out_ref:    (8, n_pad) f32, rows 0..num_heads-1 valid.
    """
    P = pos_dim
    S = out_ref.shape[0]          # 8
    n = out_ref.shape[1]          # n_pad (multiple of 128)

    x = coords_ref[...]           # (8, n) — one/two vregs, unmasked load
    par = params_ref[...]         # (8, 128) — exactly one vreg

    # Packed-slab column offsets (static).
    W1, W2, W3, WP = 0, P, 2 * P, 3 * P
    V0 = 3 * P + 2
    BP, G1, BE1, B1, G2, BE2, B2, G3, BE3, B3 = range(V0, V0 + 10)

    def col(c):
        return par[:, c:c + 1]    # (S, 1) static lane slice

    def fma_linear(w_off, b_col, h, in_dim):
        # out[s, j] = sum_k par[s, w_off+k] * h[k, j] + b[s]
        # K is 2 or 8 -> unrolled VPU broadcast-FMAs (no MXU fill/drain).
        # Two accumulators break the serial mul+add dependency chain.
        acc0 = jnp.broadcast_to(col(b_col), (S, n))
        acc1 = jnp.zeros((S, n), jnp.float32)
        for k in range(in_dim):
            term = col(w_off + k) * h[k:k + 1, :]
            if k % 2 == 0:
                acc0 = acc0 + term
            else:
                acc1 = acc1 + term
        return acc0 + acc1

    def layernorm_relu(h, g_col, be_col):
        # Normalize over the feature axis (sublanes).  Two-pass variance
        # (mean of centered squares) — robust, no negative-var cancellation.
        # h[:P] is a full-extent slice when P == 8 (the common case here).
        mu = jnp.mean(h[:P, :], axis=0, keepdims=True)
        c = h - mu
        var = jnp.mean(c[:P, :] * c[:P, :], axis=0, keepdims=True)
        z = c * jax.lax.rsqrt(var + LN_EPS) * col(g_col) + col(be_col)
        return jnp.maximum(z, 0.0)   # ReLU

    def block(h, g_c, be_c, w_off, b_c):
        return fma_linear(w_off, b_c, layernorm_relu(h, g_c, be_c), P)

    # pos_proj: Linear(2 -> pos_dim); only coord rows 0-1 are read.
    pos = fma_linear(WP, BP, x, 2)                       # (S, n)

    if residual:
        pos = pos + block(pos, G1, BE1, W1, B1)
        pos = pos + block(pos, G2, BE2, W2, B2)
        pos = block(pos, G3, BE3, W3, B3)                # rows >= H are zero
    else:
        pos = block(pos, G1, BE1, W1, B1)
        pos = block(pos, G2, BE2, W2, B2)
        pos = block(pos, G3, BE3, W3, B3)

    out_ref[...] = pos.astype(out_ref.dtype)


# ----------------------------------------------------------------------------
# Wrapper-side preprocessing (done once per param update / once ever)
# ----------------------------------------------------------------------------
def pack_params(p, *, pos_dim, num_heads):
    """Pack all DynamicPosBias parameters into one (8, 128) f32 slab.

    Lane layout: [w1 (P) | w2 (P) | w3 (P) | wp (2) |
                  bp g1 be1 b1 g2 be2 b2 g3 be3 b3 (10)]  -> 3P+12 lanes.
    Rows beyond the true out-dim (w3/b3: num_heads -> 8) are zero-padded.
    """
    P, H, S = pos_dim, num_heads, SUBLANES
    assert P <= S and H <= S, (P, H)

    def rows8(a):
        a = a.astype(jnp.float32)
        return jnp.pad(a, ((0, S - a.shape[0]), (0, 0)))

    slab = jnp.concatenate(
        [rows8(p["w1"]), rows8(p["w2"]), rows8(p["w3"]), rows8(p["wp"]),
         rows8(p["bp"]),
         rows8(p["g1"]), rows8(p["be1"]), rows8(p["b1"]),
         rows8(p["g2"]), rows8(p["be2"]), rows8(p["b2"]),
         rows8(p["g3"]), rows8(p["be3"]), rows8(p["b3"])],
        axis=1)                                            # (8, 3P+12)
    assert slab.shape[1] <= LANES, slab.shape
    return jnp.pad(slab, ((0, 0), (0, LANES - slab.shape[1])))   # (8, 128)


def make_coord_table(group_size):
    """Static (compile-time) relative-coordinate table, lane-dense.

    Returns ((8, n_pad) f32 table with rows 0-1 = (dh, dw), n) where
    n = (2*group_size - 1)^2.  Padded rows/columns are zero.
    """
    rng = jnp.arange(1 - group_size, group_size, dtype=jnp.float32)
    coords = jnp.stack(jnp.meshgrid(rng, rng, indexing="ij"), axis=0)
    coords = coords.reshape(2, -1)                         # (2, N)
    n = coords.shape[1]
    n_pad = ((n + LANES - 1) // LANES) * LANES
    table = jnp.pad(coords, ((0, SUBLANES - 2), (0, n_pad - n)))
    return table, n


# ----------------------------------------------------------------------------
# Pallas call
# ----------------------------------------------------------------------------
def dynamic_pos_bias_table(coord_table, packed_params, *, pos_dim, residual):
    """Returns the (8, n_pad) lane-dense bias slab; rows 0..H-1 are valid.

    Recommended consumer layout is (H, N): slice `[:num_heads, :n]` and index
    by (head, relative-position) directly in the attention kernel.
    """
    n_pad = coord_table.shape[1]
    vmem = pl.BlockSpec(memory_space=pltpu.MemorySpace.VMEM)
    return pl.pallas_call(
        functools.partial(dynamic_pos_bias_kernel,
                          pos_dim=pos_dim, residual=residual),
        out_shape=jax.ShapeDtypeStruct((SUBLANES, n_pad), jnp.float32),
        in_specs=[vmem, vmem],
        out_specs=vmem,
    )(coord_table, packed_params)


def dynamic_pos_bias(biases, params, *, num_heads, residual):
    """Module-semantic wrapper: biases (N, 2) -> (N, num_heads).

    Kept for parity with the PyTorch forward; performance-critical callers
    should use dynamic_pos_bias_table() with a cached coord table / packed
    params and consume the (H, N) orientation directly.
    """
    pos_dim = params["wp"].shape[0]
    n = biases.shape[0]
    n_pad = ((n + LANES - 1) // LANES) * LANES
    coords = jnp.transpose(biases).astype(jnp.float32)
    coords = jnp.pad(coords, ((0, SUBLANES - 2), (0, n_pad - n)))
    packed = pack_params(params, pos_dim=pos_dim, num_heads=num_heads)
    slab = dynamic_pos_bias_table(coords, packed,
                                  pos_dim=pos_dim, residual=residual)
    return jnp.transpose(slab[:num_heads, :n])


# ----------------------------------------------------------------------------
# Synthetic params + pure-JAX reference
# ----------------------------------------------------------------------------
def make_params(key, dim, num_heads):
    """PyTorch-style params: weights (out, in), biases / LN params (out, 1)."""
    pos_dim = dim // 4
    ks = jax.random.split(key, 8)
    scale = 0.1
    return dict(
        wp=scale * jax.random.normal(ks[0], (pos_dim, 2), jnp.float32),
        bp=scale * jax.random.normal(ks[1], (pos_dim, 1), jnp.float32),
        g1=jnp.ones((pos_dim, 1), jnp.float32),
        be1=jnp.zeros((pos_dim, 1), jnp.float32),
        w1=scale * jax.random.normal(ks[2], (pos_dim, pos_dim), jnp.float32),
        b1=scale * jax.random.normal(ks[3], (pos_dim, 1), jnp.float32),
        g2=jnp.ones((pos_dim, 1), jnp.float32),
        be2=jnp.zeros((pos_dim, 1), jnp.float32),
        w2=scale * jax.random.normal(ks[4], (pos_dim, pos_dim), jnp.float32),
        b2=scale * jax.random.normal(ks[5], (pos_dim, 1), jnp.float32),
        g3=jnp.ones((pos_dim, 1), jnp.float32),
        be3=jnp.zeros((pos_dim, 1), jnp.float32),
        w3=scale * jax.random.normal(ks[6], (num_heads, pos_dim), jnp.float32),
        b3=scale * jax.random.normal(ks[7], (num_heads, 1), jnp.float32),
    )


def reference(biases, p, *, residual):
    """Plain-JAX reference mirroring the PyTorch forward (row-major)."""
    def ln(x, g, be):
        mu = jnp.mean(x, axis=-1, keepdims=True)
        var = jnp.mean((x - mu) ** 2, axis=-1, keepdims=True)
        return (x - mu) * jax.lax.rsqrt(var + LN_EPS) * g + be

    def blk(x, g, be, w, b):
        h = ln(x, g.T, be.T)
        h = jnp.maximum(h, 0.0)
        return h @ w.T + b.T

    pos = biases @ p["wp"].T + p["bp"].T
    if residual:
        pos = pos + blk(pos, p["g1"], p["be1"], p["w1"], p["b1"])
        pos = pos + blk(pos, p["g2"], p["be2"], p["w2"], p["b2"])
        pos = blk(pos, p["g3"], p["be3"], p["w3"], p["b3"])
    else:
        pos = blk(pos, p["g1"], p["be1"], p["w1"], p["b1"])
        pos = blk(pos, p["g2"], p["be2"], p["w2"], p["b2"])
        pos = blk(pos, p["g3"], p["be3"], p["w3"], p["b3"])
    return pos


# ----------------------------------------------------------------------------
# Demo / correctness check
# ----------------------------------------------------------------------------
if __name__ == "__main__":
    dim = 32          # -> pos_dim = 8
    num_heads = 4
    residual = True
    group_size = 8    # relative position table: (2*G-1)^2 = 225 rows
    pos_dim = dim // 4

    key = jax.random.PRNGKey(0)
    params = make_params(key, dim, num_heads)

    # One-time per parameter update: pack all params into a single (8,128) slab.
    packed = pack_params(params, pos_dim=pos_dim, num_heads=num_heads)
    # Compile-time constant of group_size: lane-dense coord table.
    coord_table, n = make_coord_table(group_size)

    # Kernel: 2 input DMAs, 1 output DMA, single ungridded invocation.
    slab = dynamic_pos_bias_table(coord_table, packed,
                                  pos_dim=pos_dim, residual=residual)
    slab = jax.block_until_ready(slab)
    out_hn = slab[:num_heads, :n]          # (H, N) — recommended consumer layout

    # Reference check against the PyTorch-semantics forward (N, num_heads).
    pos_rng = jnp.arange(1 - group_size, group_size, dtype=jnp.float32)
    biases = jnp.stack(
        jnp.meshgrid(pos_rng, pos_rng, indexing="ij"), axis=-1
    ).reshape(-1, 2)                       # (225, 2)
    ref = reference(biases, params, residual=residual)

    out_nh = jnp.transpose(out_hn)         # transpose only for the test
    assert out_nh.shape == (n, num_heads), out_nh.shape
    assert jnp.allclose(out_nh, ref, atol=1e-4, rtol=1e-4), (
        float(jnp.max(jnp.abs(out_nh - ref)))
    )

    # Module-semantic wrapper path (kept for API parity) should match too.
    out_wrap = dynamic_pos_bias(biases, params,
                                num_heads=num_heads, residual=residual)
    out_wrap = jax.block_until_ready(out_wrap)
    assert jnp.allclose(out_wrap, ref, atol=1e-4, rtol=1e-4)

    print("KERNEL_OK")
</pallas_src>

<mosaic_0001>
module attributes {stable_mosaic.version = 11 : i64} {
  func.func @dynamic_pos_bias_kernel(%arg0: memref<8x256xf32, #tpu.memory_space<vmem>>, %arg1: memref<8x128xf32, #tpu.memory_space<vmem>>, %arg2: memref<8x256xf32, #tpu.memory_space<vmem>>) attributes {dimension_semantics = [], scalar_prefetch = 0 : i64, scratch_operands = 0 : i64, tpu.core_type = #tpu.core_type<tc>} {
    %c0 = arith.constant 0 : index
    %c0_0 = arith.constant 0 : index
    %0 = vector.load %arg0[%c0, %c0_0] : memref<8x256xf32, #tpu.memory_space<vmem>>, vector<8x256xf32>
    %c0_1 = arith.constant 0 : index
    %c0_2 = arith.constant 0 : index
    %1 = vector.load %arg1[%c0_1, %c0_2] : memref<8x128xf32, #tpu.memory_space<vmem>>, vector<8x128xf32>
    %2 = vector.extract_strided_slice %1 {offsets = [0, 26], sizes = [8, 1], strides = [1, 1]} : vector<8x128xf32> to vector<8x1xf32>
    %3 = vector.shape_cast %2 : vector<8x1xf32> to vector<8x1xf32>
    %4 = vector.broadcast %3 : vector<8x1xf32> to vector<8x256xf32>
    %cst = arith.constant 0.000000e+00 : f32
    %5 = vector.broadcast %cst : f32 to vector<8x256xf32>
    %6 = vector.extract_strided_slice %1 {offsets = [0, 24], sizes = [8, 1], strides = [1, 1]} : vector<8x128xf32> to vector<8x1xf32>
    %7 = vector.extract_strided_slice %0 {offsets = [0, 0], sizes = [1, 256], strides = [1, 1]} : vector<8x256xf32> to vector<1x256xf32>
    %8 = vector.broadcast %6 : vector<8x1xf32> to vector<8x256xf32>
    %9 = vector.broadcast %7 : vector<1x256xf32> to vector<8x256xf32>
    %10 = arith.mulf %8, %9 : vector<8x256xf32>
    %11 = arith.addf %4, %10 : vector<8x256xf32>
    %12 = vector.extract_strided_slice %1 {offsets = [0, 25], sizes = [8, 1], strides = [1, 1]} : vector<8x128xf32> to vector<8x1xf32>
    %13 = vector.extract_strided_slice %0 {offsets = [1, 0], sizes = [1, 256], strides = [1, 1]} : vector<8x256xf32> to vector<1x256xf32>
    %14 = vector.broadcast %12 : vector<8x1xf32> to vector<8x256xf32>
    %15 = vector.broadcast %13 : vector<1x256xf32> to vector<8x256xf32>
    %16 = arith.mulf %14, %15 : vector<8x256xf32>
    %17 = arith.addf %5, %16 : vector<8x256xf32>
    %18 = arith.addf %11, %17 : vector<8x256xf32>
    %cst_3 = arith.constant dense<0.000000e+00> : vector<256xf32>
    %19 = vector.multi_reduction <add>, %18, %cst_3 [0] : vector<8x256xf32> to vector<256xf32>
    %20 = vector.shape_cast %19 : vector<256xf32> to vector<1x256xf32>
    %cst_4 = arith.constant 8.000000e+00 : f32
    %21 = vector.broadcast %cst_4 : f32 to vector<1x256xf32>
    %22 = arith.divf %20, %21 : vector<1x256xf32>
    %23 = vector.broadcast %22 : vector<1x256xf32> to vector<8x256xf32>
    %24 = arith.subf %18, %23 : vector<8x256xf32>
    %25 = arith.mulf %24, %24 : vector<8x256xf32>
    %cst_5 = arith.constant dense<0.000000e+00> : vector<256xf32>
    %26 = vector.multi_reduction <add>, %25, %cst_5 [0] : vector<8x256xf32> to vector<256xf32>
    %27 = vector.shape_cast %26 : vector<256xf32> to vector<1x256xf32>
    %cst_6 = arith.constant 8.000000e+00 : f32
    %28 = vector.broadcast %cst_6 : f32 to vector<1x256xf32>
    %29 = arith.divf %27, %28 : vector<1x256xf32>
    %cst_7 = arith.constant 9.99999974E-6 : f32
    %30 = vector.broadcast %cst_7 : f32 to vector<1x256xf32>
    %31 = arith.addf %29, %30 : vector<1x256xf32>
    %32 = math.rsqrt %31 : vector<1x256xf32>
    %33 = vector.broadcast %32 : vector<1x256xf32> to vector<8x256xf32>
    %34 = arith.mulf %24, %33 : vector<8x256xf32>
    %35 = vector.extract_strided_slice %1 {offsets = [0, 27], sizes = [8, 1], strides = [1, 1]} : vector<8x128xf32> to vector<8x1xf32>
    %36 = vector.broadcast %35 : vector<8x1xf32> to vector<8x256xf32>
    %37 = arith.mulf %34, %36 : vector<8x256xf32>
    %38 = vector.extract_strided_slice %1 {offsets = [0, 28], sizes = [8, 1], strides = [1, 1]} : vector<8x128xf32> to vector<8x1xf32>
    %39 = vector.broadcast %38 : vector<8x1xf32> to vector<8x256xf32>
    %40 = arith.addf %37, %39 : vector<8x256xf32>
    %cst_8 = arith.constant 0.000000e+00 : f32
    %41 = vector.broadcast %cst_8 : f32 to vector<8x256xf32>
    %42 = arith.maximumf %40, %41 : vector<8x256xf32>
    %43 = vector.extract_strided_slice %1 {offsets = [0, 29], sizes = [8, 1], strides = [1, 1]} : vector<8x128xf32> to vector<8x1xf32>
    %44 = vector.shape_cast %43 : vector<8x1xf32> to vector<8x1xf32>
    %45 = vector.broadcast %44 : vector<8x1xf32> to vector<8x256xf32>
    %cst_9 = arith.constant 0.000000e+00 : f32
    %46 = vector.broadcast %cst_9 : f32 to vector<8x256xf32>
    %47 = vector.extract_strided_slice %1 {offsets = [0, 0], sizes = [8, 1], strides = [1, 1]} : vector<8x128xf32> to vector<8x1xf32>
    %48 = vector.extract_strided_slice %42 {offsets = [0, 0], sizes = [1, 256], strides = [1, 1]} : vector<8x256xf32> to vector<1x256xf32>
    %49 = vector.broadcast %47 : vector<8x1xf32> to vector<8x256xf32>
    %50 = vector.broadcast %48 : vector<1x256xf32> to vector<8x256xf32>
    %51 = arith.mulf %49, %50 : vector<8x256xf32>
    %52 = arith.addf %45, %51 : vector<8x256xf32>
    %53 = vector.extract_strided_slice %1 {offsets = [0, 1], sizes = [8, 1], strides = [1, 1]} : vector<8x128xf32> to vector<8x1xf32>
    %54 = vector.extract_strided_slice %42 {offsets = [1, 0], sizes = [1, 256], strides = [1, 1]} : vector<8x256xf32> to vector<1x256xf32>
    %55 = vector.broadcast %53 : vector<8x1xf32> to vector<8x256xf32>
    %56 = vector.broadcast %54 : vector<1x256xf32> to vector<8x256xf32>
    %57 = arith.mulf %55, %56 : vector<8x256xf32>
    %58 = arith.addf %46, %57 : vector<8x256xf32>
    %59 = vector.extract_strided_slice %1 {offsets = [0, 2], sizes = [8, 1], strides = [1, 1]} : vector<8x128xf32> to vector<8x1xf32>
    %60 = vector.extract_strided_slice %42 {offsets = [2, 0], sizes = [1, 256], strides = [1, 1]} : vector<8x256xf32> to vector<1x256xf32>
    %61 = vector.broadcast %59 : vector<8x1xf32> to vector<8x256xf32>
    %62 = vector.broadcast %60 : vector<1x256xf32> to vector<8x256xf32>
    %63 = arith.mulf %61, %62 : vector<8x256xf32>
    %64 = arith.addf %52, %63 : vector<8x256xf32>
    %65 = vector.extract_strided_slice %1 {offsets = [0, 3], sizes = [8, 1], strides = [1, 1]} : vector<8x128xf32> to vector<8x1xf32>
    %66 = vector.extract_strided_slice %42 {offsets = [3, 0], sizes = [1, 256], strides = [1, 1]} : vector<8x256xf32> to vector<1x256xf32>
    %67 = vector.broadcast %65 : vector<8x1xf32> to vector<8x256xf32>
    %68 = vector.broadcast %66 : vector<1x256xf32> to vector<8x256xf32>
    %69 = arith.mulf %67, %68 : vector<8x256xf32>
    %70 = arith.addf %58, %69 : vector<8x256xf32>
    %71 = vector.extract_strided_slice %1 {offsets = [0, 4], sizes = [8, 1], strides = [1, 1]} : vector<8x128xf32> to vector<8x1xf32>
    %72 = vector.extract_strided_slice %42 {offsets = [4, 0], sizes = [1, 256], strides = [1, 1]} : vector<8x256xf32> to vector<1x256xf32>
    %73 = vector.broadcast %71 : vector<8x1xf32> to vector<8x256xf32>
    %74 = vector.broadcast %72 : vector<1x256xf32> to vector<8x256xf32>
    %75 = arith.mulf %73, %74 : vector<8x256xf32>
    %76 = arith.addf %64, %75 : vector<8x256xf32>
    %77 = vector.extract_strided_slice %1 {offsets = [0, 5], sizes = [8, 1], strides = [1, 1]} : vector<8x128xf32> to vector<8x1xf32>
    %78 = vector.extract_strided_slice %42 {offsets = [5, 0], sizes = [1, 256], strides = [1, 1]} : vector<8x256xf32> to vector<1x256xf32>
    %79 = vector.broadcast %77 : vector<8x1xf32> to vector<8x256xf32>
    %80 = vector.broadcast %78 : vector<1x256xf32> to vector<8x256xf32>
    %81 = arith.mulf %79, %80 : vector<8x256xf32>
    %82 = arith.addf %70, %81 : vector<8x256xf32>
    %83 = vector.extract_strided_slice %1 {offsets = [0, 6], sizes = [8, 1], strides = [1, 1]} : vector<8x128xf32> to vector<8x1xf32>
    %84 = vector.extract_strided_slice %42 {offsets = [6, 0], sizes = [1, 256], strides = [1, 1]} : vector<8x256xf32> to vector<1x256xf32>
    %85 = vector.broadcast %83 : vector<8x1xf32> to vector<8x256xf32>
    %86 = vector.broadcast %84 : vector<1x256xf32> to vector<8x256xf32>
    %87 = arith.mulf %85, %86 : vector<8x256xf32>
    %88 = arith.addf %76, %87 : vector<8x256xf32>
    %89 = vector.extract_strided_slice %1 {offsets = [0, 7], sizes = [8, 1], strides = [1, 1]} : vector<8x128xf32> to vector<8x1xf32>
    %90 = vector.extract_strided_slice %42 {offsets = [7, 0], sizes = [1, 256], strides = [1, 1]} : vector<8x256xf32> to vector<1x256xf32>
    %91 = vector.broadcast %89 : vector<8x1xf32> to vector<8x256xf32>
    %92 = vector.broadcast %90 : vector<1x256xf32> to vector<8x256xf32>
    %93 = arith.mulf %91, %92 : vector<8x256xf32>
    %94 = arith.addf %82, %93 : vector<8x256xf32>
    %95 = arith.addf %88, %94 : vector<8x256xf32>
    %96 = arith.addf %18, %95 : vector<8x256xf32>
    %cst_10 = arith.constant dense<0.000000e+00> : vector<256xf32>
    %97 = vector.multi_reduction <add>, %96, %cst_10 [0] : vector<8x256xf32> to vector<256xf32>
    %98 = vector.shape_cast %97 : vector<256xf32> to vector<1x256xf32>
    %cst_11 = arith.constant 8.000000e+00 : f32
    %99 = vector.broadcast %cst_11 : f32 to vector<1x256xf32>
    %100 = arith.divf %98, %99 : vector<1x256xf32>
    %101 = vector.broadcast %100 : vector<1x256xf32> to vector<8x256xf32>
    %102 = arith.subf %96, %101 : vector<8x256xf32>
    %103 = arith.mulf %102, %102 : vector<8x256xf32>
    %cst_12 = arith.constant dense<0.000000e+00> : vector<256xf32>
    %104 = vector.multi_reduction <add>, %103, %cst_12 [0] : vector<8x256xf32> to vector<256xf32>
    %105 = vector.shape_cast %104 : vector<256xf32> to vector<1x256xf32>
    %cst_13 = arith.constant 8.000000e+00 : f32
    %106 = vector.broadcast %cst_13 : f32 to vector<1x256xf32>
    %107 = arith.divf %105, %106 : vector<1x256xf32>
    %cst_14 = arith.constant 9.99999974E-6 : f32
    %108 = vector.broadcast %cst_14 : f32 to vector<1x256xf32>
    %109 = arith.addf %107, %108 : vector<1x256xf32>
    %110 = math.rsqrt %109 : vector<1x256xf32>
    %111 = vector.broadcast %110 : vector<1x256xf32> to vector<8x256xf32>
    %112 = arith.mulf %102, %111 : vector<8x256xf32>
    %113 = vector.extract_strided_slice %1 {offsets = [0, 30], sizes = [8, 1], strides = [1, 1]} : vector<8x128xf32> to vector<8x1xf32>
    %114 = vector.broadcast %113 : vector<8x1xf32> to vector<8x256xf32>
    %115 = arith.mulf %112, %114 : vector<8x256xf32>
    %116 = vector.extract_strided_slice %1 {offsets = [0, 31], sizes = [8, 1], strides = [1, 1]} : vector<8x128xf32> to vector<8x1xf32>
    %117 = vector.broadcast %116 : vector<8x1xf32> to vector<8x256xf32>
    %118 = arith.addf %115, %117 : vector<8x256xf32>
    %cst_15 = arith.constant 0.000000e+00 : f32
    %119 = vector.broadcast %cst_15 : f32 to vector<8x256xf32>
    %120 = arith.maximumf %118, %119 : vector<8x256xf32>
    %121 = vector.extract_strided_slice %1 {offsets = [0, 32], sizes = [8, 1], strides = [1, 1]} : vector<8x128xf32> to vector<8x1xf32>
    %122 = vector.shape_cast %121 : vector<8x1xf32> to vector<8x1xf32>
    %123 = vector.broadcast %122 : vector<8x1xf32> to vector<8x256xf32>
    %cst_16 = arith.constant 0.000000e+00 : f32
    %124 = vector.broadcast %cst_16 : f32 to vector<8x256xf32>
    %125 = vector.extract_strided_slice %1 {offsets = [0, 8], sizes = [8, 1], strides = [1, 1]} : vector<8x128xf32> to vector<8x1xf32>
    %126 = vector.extract_strided_slice %120 {offsets = [0, 0], sizes = [1, 256], strides = [1, 1]} : vector<8x256xf32> to vector<1x256xf32>
    %127 = vector.broadcast %125 : vector<8x1xf32> to vector<8x256xf32>
    %128 = vector.broadcast %126 : vector<1x256xf32> to vector<8x256xf32>
    %129 = arith.mulf %127, %128 : vector<8x256xf32>
    %130 = arith.addf %123, %129 : vector<8x256xf32>
    %131 = vector.extract_strided_slice %1 {offsets = [0, 9], sizes = [8, 1], strides = [1, 1]} : vector<8x128xf32> to vector<8x1xf32>
    %132 = vector.extract_strided_slice %120 {offsets = [1, 0], sizes = [1, 256], strides = [1, 1]} : vector<8x256xf32> to vector<1x256xf32>
    %133 = vector.broadcast %131 : vector<8x1xf32> to vector<8x256xf32>
    %134 = vector.broadcast %132 : vector<1x256xf32> to vector<8x256xf32>
    %135 = arith.mulf %133, %134 : vector<8x256xf32>
    %136 = arith.addf %124, %135 : vector<8x256xf32>
    %137 = vector.extract_strided_slice %1 {offsets = [0, 10], sizes = [8, 1], strides = [1, 1]} : vector<8x128xf32> to vector<8x1xf32>
    %138 = vector.extract_strided_slice %120 {offsets = [2, 0], sizes = [1, 256], strides = [1, 1]} : vector<8x256xf32> to vector<1x256xf32>
    %139 = vector.broadcast %137 : vector<8x1xf32> to vector<8x256xf32>
    %140 = vector.broadcast %138 : vector<1x256xf32> to vector<8x256xf32>
    %141 = arith.mulf %139, %140 : vector<8x256xf32>
    %142 = arith.addf %130, %141 : vector<8x256xf32>
    %143 = vector.extract_strided_slice %1 {offsets = [0, 11], sizes = [8, 1], strides = [1, 1]} : vector<8x128xf32> to vector<8x1xf32>
    %144 = vector.extract_strided_slice %120 {offsets = [3, 0], sizes = [1, 256], strides = [1, 1]} : vector<8x256xf32> to vector<1x256xf32>
    %145 = vector.broadcast %143 : vector<8x1xf32> to vector<8x256xf32>
    %146 = vector.broadcast %144 : vector<1x256xf32> to vector<8x256xf32>
    %147 = arith.mulf %145, %146 : vector<8x256xf32>
    %148 = arith.addf %136, %147 : vector<8x256xf32>
    %149 = vector.extract_strided_slice %1 {offsets = [0, 12], sizes = [8, 1], strides = [1, 1]} : vector<8x128xf32> to vector<8x1xf32>
    %150 = vector.extract_strided_slice %120 {offsets = [4, 0], sizes = [1, 256], strides = [1, 1]} : vector<8x256xf32> to vector<1x256xf32>
    %151 = vector.broadcast %149 : vector<8x1xf32> to vector<8x256xf32>
    %152 = vector.broadcast %150 : vector<1x256xf32> to vector<8x256xf32>
    %153 = arith.mulf %151, %152 : vector<8x256xf32>
    %154 = arith.addf %142, %153 : vector<8x256xf32>
    %155 = vector.extract_strided_slice %1 {offsets = [0, 13], sizes = [8, 1], strides = [1, 1]} : vector<8x128xf32> to vector<8x1xf32>
    %156 = vector.extract_strided_slice %120 {offsets = [5, 0], sizes = [1, 256], strides = [1, 1]} : vector<8x256xf32> to vector<1x256xf32>
    %157 = vector.broadcast %155 : vector<8x1xf32> to vector<8x256xf32>
    %158 = vector.broadcast %156 : vector<1x256xf32> to vector<8x256xf32>
    %159 = arith.mulf %157, %158 : vector<8x256xf32>
    %160 = arith.addf %148, %159 : vector<8x256xf32>
    %161 = vector.extract_strided_slice %1 {offsets = [0, 14], sizes = [8, 1], strides = [1, 1]} : vector<8x128xf32> to vector<8x1xf32>
    %162 = vector.extract_strided_slice %120 {offsets = [6, 0], sizes = [1, 256], strides = [1, 1]} : vector<8x256xf32> to vector<1x256xf32>
    %163 = vector.broadcast %161 : vector<8x1xf32> to vector<8x256xf32>
    %164 = vector.broadcast %162 : vector<1x256xf32> to vector<8x256xf32>
    %165 = arith.mulf %163, %164 : vector<8x256xf32>
    %166 = arith.addf %154, %165 : vector<8x256xf32>
    %167 = vector.extract_strided_slice %1 {offsets = [0, 15], sizes = [8, 1], strides = [1, 1]} : vector<8x128xf32> to vector<8x1xf32>
    %168 = vector.extract_strided_slice %120 {offsets = [7, 0], sizes = [1, 256], strides = [1, 1]} : vector<8x256xf32> to vector<1x256xf32>
    %169 = vector.broadcast %167 : vector<8x1xf32> to vector<8x256xf32>
    %170 = vector.broadcast %168 : vector<1x256xf32> to vector<8x256xf32>
    %171 = arith.mulf %169, %170 : vector<8x256xf32>
    %172 = arith.addf %160, %171 : vector<8x256xf32>
    %173 = arith.addf %166, %172 : vector<8x256xf32>
    %174 = arith.addf %96, %173 : vector<8x256xf32>
    %cst_17 = arith.constant dense<0.000000e+00> : vector<256xf32>
    %175 = vector.multi_reduction <add>, %174, %cst_17 [0] : vector<8x256xf32> to vector<256xf32>
    %176 = vector.shape_cast %175 : vector<256xf32> to vector<1x256xf32>
    %cst_18 = arith.constant 8.000000e+00 : f32
    %177 = vector.broadcast %cst_18 : f32 to vector<1x256xf32>
    %178 = arith.divf %176, %177 : vector<1x256xf32>
    %179 = vector.broadcast %178 : vector<1x256xf32> to vector<8x256xf32>
    %180 = arith.subf %174, %179 : vector<8x256xf32>
    %181 = arith.mulf %180, %180 : vector<8x256xf32>
    %cst_19 = arith.constant dense<0.000000e+00> : vector<256xf32>
    %182 = vector.multi_reduction <add>, %181, %cst_19 [0] : vector<8x256xf32> to vector<256xf32>
    %183 = vector.shape_cast %182 : vector<256xf32> to vector<1x256xf32>
    %cst_20 = arith.constant 8.000000e+00 : f32
    %184 = vector.broadcast %cst_20 : f32 to vector<1x256xf32>
    %185 = arith.divf %183, %184 : vector<1x256xf32>
    %cst_21 = arith.constant 9.99999974E-6 : f32
    %186 = vector.broadcast %cst_21 : f32 to vector<1x256xf32>
    %187 = arith.addf %185, %186 : vector<1x256xf32>
    %188 = math.rsqrt %187 : vector<1x256xf32>
    %189 = vector.broadcast %188 : vector<1x256xf32> to vector<8x256xf32>
    %190 = arith.mulf %180, %189 : vector<8x256xf32>
    %191 = vector.extract_strided_slice %1 {offsets = [0, 33], sizes = [8, 1], strides = [1, 1]} : vector<8x128xf32> to vector<8x1xf32>
    %192 = vector.broadcast %191 : vector<8x1xf32> to vector<8x256xf32>
    %193 = arith.mulf %190, %192 : vector<8x256xf32>
    %194 = vector.extract_strided_slice %1 {offsets = [0, 34], sizes = [8, 1], strides = [1, 1]} : vector<8x128xf32> to vector<8x1xf32>
    %195 = vector.broadcast %194 : vector<8x1xf32> to vector<8x256xf32>
    %196 = arith.addf %193, %195 : vector<8x256xf32>
    %cst_22 = arith.constant 0.000000e+00 : f32
    %197 = vector.broadcast %cst_22 : f32 to vector<8x256xf32>
    %198 = arith.maximumf %196, %197 : vector<8x256xf32>
    %199 = vector.extract_strided_slice %1 {offsets = [0, 35], sizes = [8, 1], strides = [1, 1]} : vector<8x128xf32> to vector<8x1xf32>
    %200 = vector.shape_cast %199 : vector<8x1xf32> to vector<8x1xf32>
    %201 = vector.broadcast %200 : vector<8x1xf32> to vector<8x256xf32>
    %cst_23 = arith.constant 0.000000e+00 : f32
    %202 = vector.broadcast %cst_23 : f32 to vector<8x256xf32>
    %203 = vector.extract_strided_slice %1 {offsets = [0, 16], sizes = [8, 1], strides = [1, 1]} : vector<8x128xf32> to vector<8x1xf32>
    %204 = vector.extract_strided_slice %198 {offsets = [0, 0], sizes = [1, 256], strides = [1, 1]} : vector<8x256xf32> to vector<1x256xf32>
    %205 = vector.broadcast %203 : vector<8x1xf32> to vector<8x256xf32>
    %206 = vector.broadcast %204 : vector<1x256xf32> to vector<8x256xf32>
    %207 = arith.mulf %205, %206 : vector<8x256xf32>
    %208 = arith.addf %201, %207 : vector<8x256xf32>
    %209 = vector.extract_strided_slice %1 {offsets = [0, 17], sizes = [8, 1], strides = [1, 1]} : vector<8x128xf32> to vector<8x1xf32>
    %210 = vector.extract_strided_slice %198 {offsets = [1, 0], sizes = [1, 256], strides = [1, 1]} : vector<8x256xf32> to vector<1x256xf32>
    %211 = vector.broadcast %209 : vector<8x1xf32> to vector<8x256xf32>
    %212 = vector.broadcast %210 : vector<1x256xf32> to vector<8x256xf32>
    %213 = arith.mulf %211, %212 : vector<8x256xf32>
    %214 = arith.addf %202, %213 : vector<8x256xf32>
    %215 = vector.extract_strided_slice %1 {offsets = [0, 18], sizes = [8, 1], strides = [1, 1]} : vector<8x128xf32> to vector<8x1xf32>
    %216 = vector.extract_strided_slice %198 {offsets = [2, 0], sizes = [1, 256], strides = [1, 1]} : vector<8x256xf32> to vector<1x256xf32>
    %217 = vector.broadcast %215 : vector<8x1xf32> to vector<8x256xf32>
    %218 = vector.broadcast %216 : vector<1x256xf32> to vector<8x256xf32>
    %219 = arith.mulf %217, %218 : vector<8x256xf32>
    %220 = arith.addf %208, %219 : vector<8x256xf32>
    %221 = vector.extract_strided_slice %1 {offsets = [0, 19], sizes = [8, 1], strides = [1, 1]} : vector<8x128xf32> to vector<8x1xf32>
    %222 = vector.extract_strided_slice %198 {offsets = [3, 0], sizes = [1, 256], strides = [1, 1]} : vector<8x256xf32> to vector<1x256xf32>
    %223 = vector.broadcast %221 : vector<8x1xf32> to vector<8x256xf32>
    %224 = vector.broadcast %222 : vector<1x256xf32> to vector<8x256xf32>
    %225 = arith.mulf %223, %224 : vector<8x256xf32>
    %226 = arith.addf %214, %225 : vector<8x256xf32>
    %227 = vector.extract_strided_slice %1 {offsets = [0, 20], sizes = [8, 1], strides = [1, 1]} : vector<8x128xf32> to vector<8x1xf32>
    %228 = vector.extract_strided_slice %198 {offsets = [4, 0], sizes = [1, 256], strides = [1, 1]} : vector<8x256xf32> to vector<1x256xf32>
    %229 = vector.broadcast %227 : vector<8x1xf32> to vector<8x256xf32>
    %230 = vector.broadcast %228 : vector<1x256xf32> to vector<8x256xf32>
    %231 = arith.mulf %229, %230 : vector<8x256xf32>
    %232 = arith.addf %220, %231 : vector<8x256xf32>
    %233 = vector.extract_strided_slice %1 {offsets = [0, 21], sizes = [8, 1], strides = [1, 1]} : vector<8x128xf32> to vector<8x1xf32>
    %234 = vector.extract_strided_slice %198 {offsets = [5, 0], sizes = [1, 256], strides = [1, 1]} : vector<8x256xf32> to vector<1x256xf32>
    %235 = vector.broadcast %233 : vector<8x1xf32> to vector<8x256xf32>
    %236 = vector.broadcast %234 : vector<1x256xf32> to vector<8x256xf32>
    %237 = arith.mulf %235, %236 : vector<8x256xf32>
    %238 = arith.addf %226, %237 : vector<8x256xf32>
    %239 = vector.extract_strided_slice %1 {offsets = [0, 22], sizes = [8, 1], strides = [1, 1]} : vector<8x128xf32> to vector<8x1xf32>
    %240 = vector.extract_strided_slice %198 {offsets = [6, 0], sizes = [1, 256], strides = [1, 1]} : vector<8x256xf32> to vector<1x256xf32>
    %241 = vector.broadcast %239 : vector<8x1xf32> to vector<8x256xf32>
    %242 = vector.broadcast %240 : vector<1x256xf32> to vector<8x256xf32>
    %243 = arith.mulf %241, %242 : vector<8x256xf32>
    %244 = arith.addf %232, %243 : vector<8x256xf32>
    %245 = vector.extract_strided_slice %1 {offsets = [0, 23], sizes = [8, 1], strides = [1, 1]} : vector<8x128xf32> to vector<8x1xf32>
    %246 = vector.extract_strided_slice %198 {offsets = [7, 0], sizes = [1, 256], strides = [1, 1]} : vector<8x256xf32> to vector<1x256xf32>
    %247 = vector.broadcast %245 : vector<8x1xf32> to vector<8x256xf32>
    %248 = vector.broadcast %246 : vector<1x256xf32> to vector<8x256xf32>
    %249 = arith.mulf %247, %248 : vector<8x256xf32>
    %250 = arith.addf %238, %249 : vector<8x256xf32>
    %251 = arith.addf %244, %250 : vector<8x256xf32>
    %c0_24 = arith.constant 0 : index
    %c0_25 = arith.constant 0 : index
    %252 = vector.load %arg2[%c0_24, %c0_25] : memref<8x256xf32, #tpu.memory_space<vmem>>, vector<8x256xf32>
    tpu.vector_store %arg2[%c0_24, %c0_25], %251 {strides = array<i32>} : memref<8x256xf32, #tpu.memory_space<vmem>>, vector<8x256xf32>,
    return
  }
}

</mosaic_0001>

<llo_original>
// kernel: tpu_custom_call.1
$region0: #{tpu_custom_call.1}
  #allocation0 [shape = 'u32[]', space=smem, size = 0x4, offset = 0x4, fixed_abs, tag = 'smem constant byte address 0x4 - core index']
  #allocation1 [shape = 'u32[144,128]{1,0:T(1,128)}', space=vmem, size = 0x12000, scoped, tag = 'internal scratch']
  %s0 = inlined_call_operand.hbm [shape: f32[8,256], index: 0, kind: input, shape index: {}]
  %s1 = inlined_call_operand.hbm [shape: f32[8,128], index: 1, kind: input, shape index: {}]
  %s2 = inlined_call_operand.hbm [shape: f32[8,256], index: 2, kind: output, shape index: {}]
  %s3 = sld [smem:[#allocation0]]
  $region26: #{tpu_custom_call.1} parent=0
    _
  %s5 = ssub.s32 1, %s3
  %s6 = scalar_select 0, %s5, %s3
  $region1: #{tpu_custom_call.1} parent=0
    #allocation2 [shape = 'u8[8192]{0}', space=vmem, size = 0x2000, scoped, tag = 'input window, operand 0, single buffered']
    #allocation3 [shape = 's32[1]{0}', space=sflag, size = 0x4, scoped, tag = 'scoped memory for tpu_custom_call.1']
    #allocation4 [shape = 's32[1]{0}', space=sflag, size = 0x4, scoped, tag = 'scoped memory for tpu_custom_call.1']
    #allocation5 [shape = 'u8[4096]{0}', space=vmem, size = 0x1000, scoped, tag = 'input window, operand 1, single buffered']
    #allocation6 [shape = 's32[1]{0}', space=sflag, size = 0x4, scoped, tag = 'scoped memory for tpu_custom_call.1']
    #allocation7 [shape = 'u8[8192]{0}', space=vmem, size = 0x2000, scoped, tag = 'output window, operand 0, single buffered']
    %7 = vsyncpa [#allocation3], 0
    %8 = vsyncpa [#allocation6], 0
    %9 = vsyncpa [#allocation4], 0
    // Predicated region
    $region2: #{tpu_custom_call.1} parent=1 // pred_check
      _
    $region3: #{tpu_custom_call.1} parent=1 // pred_check_branch
      %11 = sbr.rel (0) target = $region5
    $region4: #{tpu_custom_call.1} parent=1 // pred_region
      %s13 = ssub.s32 256, 256
      %14 = vsyncadd [#allocation3], %s13
      %s16 = sshll.u32 [#allocation2], 4
      %s17 = int_to_ptr.vmem [resolvable:$true] %s16
      %19 = dma.hbm_to_vmem [thread:$0]  %s0, 256, %s17, [#allocation3]
    $region5: #{tpu_custom_call.1} parent=1 // pred_fallthru
      _
    // Predicated region
    $region6: #{tpu_custom_call.1} parent=1 // pred_check
      _
    $region7: #{tpu_custom_call.1} parent=1 // pred_check_branch
      %21 = sbr.rel (0) target = $region9
    $region8: #{tpu_custom_call.1} parent=1 // pred_region
      %s23 = ssub.s32 128, 128
      %24 = vsyncadd [#allocation6], %s23
      %s26 = sshll.u32 [#allocation5], 4
      %s27 = int_to_ptr.vmem [resolvable:$true] %s26
      %29 = dma.hbm_to_vmem [thread:$0]  %s1, 128, %s27, [#allocation6]
    $region9: #{tpu_custom_call.1} parent=1 // pred_fallthru
      _
    // Predicated region
    $region10: #{tpu_custom_call.1} parent=1 // pred_check
      _
    $region11: #{tpu_custom_call.1} parent=1 // pred_check_branch
      %31 = sbr.rel (0) target = $region13
    $region12: #{tpu_custom_call.1} parent=1 // pred_region
      %32 = dma.done [#allocation3], 256
    $region13: #{tpu_custom_call.1} parent=1 // pred_fallthru
      _
    // Predicated region
    $region14: #{tpu_custom_call.1} parent=1 // pred_check
      _
    $region15: #{tpu_custom_call.1} parent=1 // pred_check_branch
      %34 = sbr.rel (0) target = $region17
    $region16: #{tpu_custom_call.1} parent=1 // pred_region
      %35 = dma.done [#allocation6], 128
    $region17: #{tpu_custom_call.1} parent=1 // pred_fallthru
      _
    %v36 = vld [vmem:[#allocation2] sm:$0xff]
    %v37 = vld [vmem:[#allocation2 + $0x8] sm:$0xff]
    %v38 = vld [vmem:[#allocation5] sm:$0xff]
    %40 = vset.pattern.permute.xlu0 26
    %41 = vperm.xlu0 %40, %v38
    %v42 = vpop.permute.xlu0 %41
    %44 = vset.pattern.permute.xlu0 24
    %45 = vperm.xlu0 %44, %v38
    %v46 = vpop.permute.xlu0 %45
    %v48 = vlaneseq
    %v49 = vshrl.u32 %v48, 7
    %v50 = vsub.s32 0, %v49
    %v51 = vrot.slane %v36, %v50
    %v52 = vlaneseq
    %v53 = vshrl.u32 %v52, 7
    %v54 = vsub.s32 0, %v53
    %v55 = vrot.slane %v37, %v54
    %v56 = vmul.f32 %v46, %v51
    %v57 = vmul.f32 %v46, %v55
    %v58 = vadd.f32 %v42, %v56
    %v59 = vadd.f32 %v42, %v57
    %60 = vset.pattern.permute.xlu0 25
    %61 = vperm.xlu0 %60, %v38
    %v62 = vpop.permute.xlu0 %61
    %v64 = vlaneseq
    %v65 = vshrl.u32 %v64, 7
    %v66 = vsub.s32 1, %v65
    %v67 = vrot.slane %v36, %v66
    %v68 = vlaneseq
    %v69 = vshrl.u32 %v68, 7
    %v70 = vsub.s32 1, %v69
    %v71 = vrot.slane %v37, %v70
    %v72 = vmul.f32 %v62, %v67
    %v73 = vmul.f32 %v62, %v71
    %v74 = vadd.f32 %v72, 0.0
    %v75 = vadd.f32 %v73, 0.0
    %v76 = vadd.f32 %v58, %v74
    %v77 = vadd.f32 %v59, %v75
    %v78 = vrot.slane %v76, 4
    %v79 = vadd.f32 %v76, %v78
    %v80 = vrot.slane %v79, 2
    %v81 = vadd.f32 %v79, %v80
    %v82 = vrot.slane %v81, 1
    %v83 = vadd.f32 %v81, %v82
    %v84 = vrot.slane %v77, 4
    %v85 = vadd.f32 %v77, %v84
    %v86 = vrot.slane %v85, 2
    %v87 = vadd.f32 %v85, %v86
    %v88 = vrot.slane %v87, 1
    %v89 = vadd.f32 %v87, %v88
    %v90 = vrcp.pop 8.0
    %v91 = vmul.f32 %v83, %v90
    %v92 = vmul.f32 %v89, %v90
    %v93 = vsub.f32 %v76, %v91
    %v94 = vsub.f32 %v77, %v92
    %v95 = vmul.f32 %v93, %v93
    %v96 = vmul.f32 %v94, %v94
    %v97 = vrot.slane %v95, 4
    %v98 = vadd.f32 %v95, %v97
    %v99 = vrot.slane %v98, 2
    %v100 = vadd.f32 %v98, %v99
    %v101 = vrot.slane %v100, 1
    %v102 = vadd.f32 %v100, %v101
    %v103 = vrot.slane %v96, 4
    %v104 = vadd.f32 %v96, %v103
    %v105 = vrot.slane %v104, 2
    %v106 = vadd.f32 %v104, %v105
    %v107 = vrot.slane %v106, 1
    %v108 = vadd.f32 %v106, %v107
    %v109 = vmul.f32 %v102, %v90
    %v110 = vmul.f32 %v108, %v90
    %v111 = vadd.f32 %v109, 1e-05
    %v112 = vadd.f32 %v110, 1e-05
    %v113 = vrsqrt.pop %v111
    %v114 = vrsqrt.pop %v112
    %v115 = vmul.f32 %v93, %v113
    %v116 = vmul.f32 %v94, %v114
    %117 = vset.pattern.permute.xlu0 27
    %118 = vperm.xlu0 %117, %v38
    %v119 = vpop.permute.xlu0 %118
    %v121 = vmul.f32 %v115, %v119
    %v122 = vmul.f32 %v116, %v119
    %123 = vset.pattern.permute.xlu0 28
    %124 = vperm.xlu0 %123, %v38
    %v125 = vpop.permute.xlu0 %124
    %v127 = vadd.f32 %v121, %v125
    %v128 = vadd.f32 %v122, %v125
    %v129 = vmax.f32 %v127, 0.0
    %v130 = vmax.f32 %v128, 0.0
    %131 = vset.pattern.permute.xlu0 29
    %132 = vperm.xlu0 %131, %v38
    %v133 = vpop.permute.xlu0 %132
    %135 = vset.pattern.permute.xlu0 0
    %136 = vperm.xlu0 %135, %v38
    %v137 = vpop.permute.xlu0 %136
    %v139 = vlaneseq
    %v140 = vshrl.u32 %v139, 7
    %v141 = vsub.s32 0, %v140
    %v142 = vrot.slane %v129, %v141
    %v143 = vlaneseq
    %v144 = vshrl.u32 %v143, 7
    %v145 = vsub.s32 0, %v144
    %v146 = vrot.slane %v130, %v145
    %v147 = vmul.f32 %v137, %v142
    %v148 = vmul.f32 %v137, %v146
    %v149 = vadd.f32 %v133, %v147
    %v150 = vadd.f32 %v133, %v148
    %151 = vset.pattern.permute.xlu0 1
    %152 = vperm.xlu0 %151, %v38
    %v153 = vpop.permute.xlu0 %152
    %v155 = vlaneseq
    %v156 = vshrl.u32 %v155, 7
    %v157 = vsub.s32 1, %v156
    %v158 = vrot.slane %v129, %v157
    %v159 = vlaneseq
    %v160 = vshrl.u32 %v159, 7
    %v161 = vsub.s32 1, %v160
    %v162 = vrot.slane %v130, %v161
    %v163 = vmul.f32 %v153, %v158
    %v164 = vmul.f32 %v153, %v162
    %v165 = vadd.f32 %v163, 0.0
    %v166 = vadd.f32 %v164, 0.0
    %167 = vset.pattern.permute.xlu0 2
    %168 = vperm.xlu0 %167, %v38
    %v169 = vpop.permute.xlu0 %168
    %v171 = vlaneseq
    %v172 = vshrl.u32 %v171, 7
    %v173 = vsub.s32 2, %v172
    %v174 = vrot.slane %v129, %v173
    %v175 = vlaneseq
    %v176 = vshrl.u32 %v175, 7
    %v177 = vsub.s32 2, %v176
    %v178 = vrot.slane %v130, %v177
    %v179 = vmul.f32 %v169, %v174
    %v180 = vmul.f32 %v169, %v178
    %v181 = vadd.f32 %v149, %v179
    %v182 = vadd.f32 %v150, %v180
    %183 = vset.pattern.permute.xlu0 3
    %184 = vperm.xlu0 %183, %v38
    %v185 = vpop.permute.xlu0 %184
    %v187 = vlaneseq
    %v188 = vshrl.u32 %v187, 7
    %v189 = vsub.s32 3, %v188
    %v190 = vrot.slane %v129, %v189
    %v191 = vlaneseq
    %v192 = vshrl.u32 %v191, 7
    %v193 = vsub.s32 3, %v192
    %v194 = vrot.slane %v130, %v193
    %v195 = vmul.f32 %v185, %v190
    %v196 = vmul.f32 %v185, %v194
    %v197 = vadd.f32 %v165, %v195
    %v198 = vadd.f32 %v166, %v196
    %199 = vset.pattern.permute.xlu0 4
    %200 = vperm.xlu0 %199, %v38
    %v201 = vpop.permute.xlu0 %200
    %v203 = vlaneseq
    %v204 = vshrl.u32 %v203, 7
    %v205 = vsub.s32 4, %v204
    %v206 = vrot.slane %v129, %v205
    %v207 = vlaneseq
    %v208 = vshrl.u32 %v207, 7
    %v209 = vsub.s32 4, %v208
    %v210 = vrot.slane %v130, %v209
    %v211 = vmul.f32 %v201, %v206
    %v212 = vmul.f32 %v201, %v210
    %v213 = vadd.f32 %v181, %v211
    %v214 = vadd.f32 %v182, %v212
    %215 = vset.pattern.permute.xlu0 5
    %216 = vperm.xlu0 %215, %v38
    %v217 = vpop.permute.xlu0 %216
    %v219 = vlaneseq
    %v220 = vshrl.u32 %v219, 7
    %v221 = vsub.s32 5, %v220
    %v222 = vrot.slane %v129, %v221
    %v223 = vlaneseq
    %v224 = vshrl.u32 %v223, 7
    %v225 = vsub.s32 5, %v224
    %v226 = vrot.slane %v130, %v225
    %v227 = vmul.f32 %v217, %v222
    %v228 = vmul.f32 %v217, %v226
    %v229 = vadd.f32 %v197, %v227
    %v230 = vadd.f32 %v198, %v228
    %231 = vset.pattern.permute.xlu0 6
    %232 = vperm.xlu0 %231, %v38
    %v233 = vpop.permute.xlu0 %232
    %v235 = vlaneseq
    %v236 = vshrl.u32 %v235, 7
    %v237 = vsub.s32 6, %v236
    %v238 = vrot.slane %v129, %v237
    %v239 = vlaneseq
    %v240 = vshrl.u32 %v239, 7
    %v241 = vsub.s32 6, %v240
    %v242 = vrot.slane %v130, %v241
    %v243 = vmul.f32 %v233, %v238
    %v244 = vmul.f32 %v233, %v242
    %v245 = vadd.f32 %v213, %v243
    %v246 = vadd.f32 %v214, %v244
    %247 = vset.pattern.permute.xlu0 7
    %248 = vperm.xlu0 %247, %v38
    %v249 = vpop.permute.xlu0 %248
    %v251 = vlaneseq
    %v252 = vshrl.u32 %v251, 7
    %v253 = vsub.s32 7, %v252
    %v254 = vrot.slane %v129, %v253
    %v255 = vlaneseq
    %v256 = vshrl.u32 %v255, 7
    %v257 = vsub.s32 7, %v256
    %v258 = vrot.slane %v130, %v257
    %v259 = vmul.f32 %v249, %v254
    %v260 = vmul.f32 %v249, %v258
    %v261 = vadd.f32 %v229, %v259
    %v262 = vadd.f32 %v230, %v260
    %v263 = vadd.f32 %v245, %v261
    %v264 = vadd.f32 %v246, %v262
    %v265 = vadd.f32 %v76, %v263
    %v266 = vadd.f32 %v77, %v264
    %v267 = vrot.slane %v265, 4
    %v268 = vadd.f32 %v265, %v267
    %v269 = vrot.slane %v268, 2
    %v270 = vadd.f32 %v268, %v269
    %v271 = vrot.slane %v270, 1
    %v272 = vadd.f32 %v270, %v271
    %v273 = vrot.slane %v266, 4
    %v274 = vadd.f32 %v266, %v273
    %v275 = vrot.slane %v274, 2
    %v276 = vadd.f32 %v274, %v275
    %v277 = vrot.slane %v276, 1
    %v278 = vadd.f32 %v276, %v277
    %v279 = vmul.f32 %v272, %v90
    %v280 = vmul.f32 %v278, %v90
    %v281 = vsub.f32 %v265, %v279
    %v282 = vsub.f32 %v266, %v280
    %v283 = vmul.f32 %v281, %v281
    %v284 = vmul.f32 %v282, %v282
    %v285 = vrot.slane %v283, 4
    %v286 = vadd.f32 %v283, %v285
    %v287 = vrot.slane %v286, 2
    %v288 = vadd.f32 %v286, %v287
    %v289 = vrot.slane %v288, 1
    %v290 = vadd.f32 %v288, %v289
    %v291 = vrot.slane %v284, 4
    %v292 = vadd.f32 %v284, %v291
    %v293 = vrot.slane %v292, 2
    %v294 = vadd.f32 %v292, %v293
    %v295 = vrot.slane %v294, 1
    %v296 = vadd.f32 %v294, %v295
    %v297 = vmul.f32 %v290, %v90
    %v298 = vmul.f32 %v296, %v90
    %v299 = vadd.f32 %v297, 1e-05
    %v300 = vadd.f32 %v298, 1e-05
    %v301 = vrsqrt.pop %v299
    %v302 = vrsqrt.pop %v300
    %v303 = vmul.f32 %v281, %v301
    %v304 = vmul.f32 %v282, %v302
    %305 = vset.pattern.permute.xlu0 30
    %306 = vperm.xlu0 %305, %v38
    %v307 = vpop.permute.xlu0 %306
    %v309 = vmul.f32 %v303, %v307
    %v310 = vmul.f32 %v304, %v307
    %311 = vset.pattern.permute.xlu0 31
    %312 = vperm.xlu0 %311, %v38
    %v313 = vpop.permute.xlu0 %312
    %v315 = vadd.f32 %v309, %v313
    %v316 = vadd.f32 %v310, %v313
    %v317 = vmax.f32 %v315, 0.0
    %v318 = vmax.f32 %v316, 0.0
    %319 = vset.pattern.permute.xlu0 32
    %320 = vperm.xlu0 %319, %v38
    %v321 = vpop.permute.xlu0 %320
    %323 = vset.pattern.permute.xlu0 8
    %324 = vperm.xlu0 %323, %v38
    %v325 = vpop.permute.xlu0 %324
    %v327 = vlaneseq
    %v328 = vshrl.u32 %v327, 7
    %v329 = vsub.s32 0, %v328
    %v330 = vrot.slane %v317, %v329
    %v331 = vlaneseq
    %v332 = vshrl.u32 %v331, 7
    %v333 = vsub.s32 0, %v332
    %v334 = vrot.slane %v318, %v333
    %v335 = vmul.f32 %v325, %v330
    %v336 = vmul.f32 %v325, %v334
    %v337 = vadd.f32 %v321, %v335
    %v338 = vadd.f32 %v321, %v336
    %339 = vset.pattern.permute.xlu0 9
    %340 = vperm.xlu0 %339, %v38
    %v341 = vpop.permute.xlu0 %340
    %v343 = vlaneseq
    %v344 = vshrl.u32 %v343, 7
    %v345 = vsub.s32 1, %v344
    %v346 = vrot.slane %v317, %v345
    %v347 = vlaneseq
    %v348 = vshrl.u32 %v347, 7
    %v349 = vsub.s32 1, %v348
    %v350 = vrot.slane %v318, %v349
    %v351 = vmul.f32 %v341, %v346
    %v352 = vmul.f32 %v341, %v350
    %v353 = vadd.f32 %v351, 0.0
    %v354 = vadd.f32 %v352, 0.0
    %355 = vset.pattern.permute.xlu0 10
    %356 = vperm.xlu0 %355, %v38
    %v357 = vpop.permute.xlu0 %356
    %v359 = vlaneseq
    %v360 = vshrl.u32 %v359, 7
    %v361 = vsub.s32 2, %v360
    %v362 = vrot.slane %v317, %v361
    %v363 = vlaneseq
    %v364 = vshrl.u32 %v363, 7
    %v365 = vsub.s32 2, %v364
    %v366 = vrot.slane %v318, %v365
    %v367 = vmul.f32 %v357, %v362
    %v368 = vmul.f32 %v357, %v366
    %v369 = vadd.f32 %v337, %v367
    %v370 = vadd.f32 %v338, %v368
    %371 = vset.pattern.permute.xlu0 11
    %372 = vperm.xlu0 %371, %v38
    %v373 = vpop.permute.xlu0 %372
    %v375 = vlaneseq
    %v376 = vshrl.u32 %v375, 7
    %v377 = vsub.s32 3, %v376
    %v378 = vrot.slane %v317, %v377
    %v379 = vlaneseq
    %v380 = vshrl.u32 %v379, 7
    %v381 = vsub.s32 3, %v380
    %v382 = vrot.slane %v318, %v381
    %v383 = vmul.f32 %v373, %v378
    %v384 = vmul.f32 %v373, %v382
    %v385 = vadd.f32 %v353, %v383
    %v386 = vadd.f32 %v354, %v384
    %387 = vset.pattern.permute.xlu0 12
    %388 = vperm.xlu0 %387, %v38
    %v389 = vpop.permute.xlu0 %388
    %v391 = vlaneseq
    %v392 = vshrl.u32 %v391, 7
    %v393 = vsub.s32 4, %v392
    %v394 = vrot.slane %v317, %v393
    %v395 = vlaneseq
    %v396 = vshrl.u32 %v395, 7
    %v397 = vsub.s32 4, %v396
    %v398 = vrot.slane %v318, %v397
    %v399 = vmul.f32 %v389, %v394
    %v400 = vmul.f32 %v389, %v398
    %v401 = vadd.f32 %v369, %v399
    %v402 = vadd.f32 %v370, %v400
    %403 = vset.pattern.permute.xlu0 13
    %404 = vperm.xlu0 %403, %v38
    %v405 = vpop.permute.xlu0 %404
    %v407 = vlaneseq
    %v408 = vshrl.u32 %v407, 7
    %v409 = vsub.s32 5, %v408
    %v410 = vrot.slane %v317, %v409
    %v411 = vlaneseq
    %v412 = vshrl.u32 %v411, 7
    %v413 = vsub.s32 5, %v412
    %v414 = vrot.slane %v318, %v413
    %v415 = vmul.f32 %v405, %v410
    %v416 = vmul.f32 %v405, %v414
    %v417 = vadd.f32 %v385, %v415
    %v418 = vadd.f32 %v386, %v416
    %419 = vset.pattern.permute.xlu0 14
    %420 = vperm.xlu0 %419, %v38
    %v421 = vpop.permute.xlu0 %420
    %v423 = vlaneseq
    %v424 = vshrl.u32 %v423, 7
    %v425 = vsub.s32 6, %v424
    %v426 = vrot.slane %v317, %v425
    %v427 = vlaneseq
    %v428 = vshrl.u32 %v427, 7
    %v429 = vsub.s32 6, %v428
    %v430 = vrot.slane %v318, %v429
    %v431 = vmul.f32 %v421, %v426
    %v432 = vmul.f32 %v421, %v430
    %v433 = vadd.f32 %v401, %v431
    %v434 = vadd.f32 %v402, %v432
    %435 = vset.pattern.permute.xlu0 15
    %436 = vperm.xlu0 %435, %v38
    %v437 = vpop.permute.xlu0 %436
    %v439 = vlaneseq
    %v440 = vshrl.u32 %v439, 7
    %v441 = vsub.s32 7, %v440
    %v442 = vrot.slane %v317, %v441
    %v443 = vlaneseq
    %v444 = vshrl.u32 %v443, 7
    %v445 = vsub.s32 7, %v444
    %v446 = vrot.slane %v318, %v445
    %v447 = vmul.f32 %v437, %v442
    %v448 = vmul.f32 %v437, %v446
    %v449 = vadd.f32 %v417, %v447
    %v450 = vadd.f32 %v418, %v448
    %v451 = vadd.f32 %v433, %v449
    %v452 = vadd.f32 %v434, %v450
    %v453 = vadd.f32 %v265, %v451
    %v454 = vadd.f32 %v266, %v452
    %v455 = vrot.slane %v453, 4
    %v456 = vadd.f32 %v453, %v455
    %v457 = vrot.slane %v456, 2
    %v458 = vadd.f32 %v456, %v457
    %v459 = vrot.slane %v458, 1
    %v460 = vadd.f32 %v458, %v459
    %v461 = vrot.slane %v454, 4
    %v462 = vadd.f32 %v454, %v461
    %v463 = vrot.slane %v462, 2
    %v464 = vadd.f32 %v462, %v463
    %v465 = vrot.slane %v464, 1
    %v466 = vadd.f32 %v464, %v465
    %v467 = vmul.f32 %v460, %v90
    %v468 = vmul.f32 %v466, %v90
    %v469 = vsub.f32 %v453, %v467
    %v470 = vsub.f32 %v454, %v468
    %v471 = vmul.f32 %v469, %v469
    %v472 = vmul.f32 %v470, %v470
    %v473 = vrot.slane %v471, 4
    %v474 = vadd.f32 %v471, %v473
    %v475 = vrot.slane %v474, 2
    %v476 = vadd.f32 %v474, %v475
    %v477 = vrot.slane %v476, 1
    %v478 = vadd.f32 %v476, %v477
    %v479 = vrot.slane %v472, 4
    %v480 = vadd.f32 %v472, %v479
    %v481 = vrot.slane %v480, 2
    %v482 = vadd.f32 %v480, %v481
    %v483 = vrot.slane %v482, 1
    %v484 = vadd.f32 %v482, %v483
    %v485 = vmul.f32 %v478, %v90
    %v486 = vmul.f32 %v484, %v90
    %v487 = vadd.f32 %v485, 1e-05
    %v488 = vadd.f32 %v486, 1e-05
    %v489 = vrsqrt.pop %v487
    %v490 = vrsqrt.pop %v488
    %v491 = vmul.f32 %v469, %v489
    %v492 = vmul.f32 %v470, %v490
    %493 = vset.pattern.permute.xlu0 33
    %494 = vperm.xlu0 %493, %v38
    %v495 = vpop.permute.xlu0 %494
    %v497 = vmul.f32 %v491, %v495
    %v498 = vmul.f32 %v492, %v495
    %499 = vset.pattern.permute.xlu0 34
    %500 = vperm.xlu0 %499, %v38
    %v501 = vpop.permute.xlu0 %500
    %v503 = vadd.f32 %v497, %v501
    %v504 = vadd.f32 %v498, %v501
    %v505 = vmax.f32 %v503, 0.0
    %v506 = vmax.f32 %v504, 0.0
    %507 = vset.pattern.permute.xlu0 35
    %508 = vperm.xlu0 %507, %v38
    %v509 = vpop.permute.xlu0 %508
    %511 = vset.pattern.permute.xlu0 16
    %512 = vperm.xlu0 %511, %v38
    %v513 = vpop.permute.xlu0 %512
    %v515 = vlaneseq
    %v516 = vshrl.u32 %v515, 7
    %v517 = vsub.s32 0, %v516
    %v518 = vrot.slane %v505, %v517
    %v519 = vlaneseq
    %v520 = vshrl.u32 %v519, 7
    %v521 = vsub.s32 0, %v520
    %v522 = vrot.slane %v506, %v521
    %v523 = vmul.f32 %v513, %v518
    %v524 = vmul.f32 %v513, %v522
    %v525 = vadd.f32 %v509, %v523
    %v526 = vadd.f32 %v509, %v524
    %527 = vset.pattern.permute.xlu0 17
    %528 = vperm.xlu0 %527, %v38
    %v529 = vpop.permute.xlu0 %528
    %v531 = vlaneseq
    %v532 = vshrl.u32 %v531, 7
    %v533 = vsub.s32 1, %v532
    %v534 = vrot.slane %v505, %v533
    %v535 = vlaneseq
    %v536 = vshrl.u32 %v535, 7
    %v537 = vsub.s32 1, %v536
    %v538 = vrot.slane %v506, %v537
    %v539 = vmul.f32 %v529, %v534
    %v540 = vmul.f32 %v529, %v538
    %v541 = vadd.f32 %v539, 0.0
    %v542 = vadd.f32 %v540, 0.0
    %543 = vset.pattern.permute.xlu0 18
    %544 = vperm.xlu0 %543, %v38
    %v545 = vpop.permute.xlu0 %544
    %v547 = vlaneseq
    %v548 = vshrl.u32 %v547, 7
    %v549 = vsub.s32 2, %v548
    %v550 = vrot.slane %v505, %v549
    %v551 = vlaneseq
    %v552 = vshrl.u32 %v551, 7
    %v553 = vsub.s32 2, %v552
    %v554 = vrot.slane %v506, %v553
    %v555 = vmul.f32 %v545, %v550
    %v556 = vmul.f32 %v545, %v554
    %v557 = vadd.f32 %v525, %v555
    %v558 = vadd.f32 %v526, %v556
    %559 = vset.pattern.permute.xlu0 19
    %560 = vperm.xlu0 %559, %v38
    %v561 = vpop.permute.xlu0 %560
    %v563 = vlaneseq
    %v564 = vshrl.u32 %v563, 7
    %v565 = vsub.s32 3, %v564
    %v566 = vrot.slane %v505, %v565
    %v567 = vlaneseq
    %v568 = vshrl.u32 %v567, 7
    %v569 = vsub.s32 3, %v568
    %v570 = vrot.slane %v506, %v569
    %v571 = vmul.f32 %v561, %v566
    %v572 = vmul.f32 %v561, %v570
    %v573 = vadd.f32 %v541, %v571
    %v574 = vadd.f32 %v542, %v572
    %575 = vset.pattern.permute.xlu0 20
    %576 = vperm.xlu0 %575, %v38
    %v577 = vpop.permute.xlu0 %576
    %v579 = vlaneseq
    %v580 = vshrl.u32 %v579, 7
    %v581 = vsub.s32 4, %v580
    %v582 = vrot.slane %v505, %v581
    %v583 = vlaneseq
    %v584 = vshrl.u32 %v583, 7
    %v585 = vsub.s32 4, %v584
    %v586 = vrot.slane %v506, %v585
    %v587 = vmul.f32 %v577, %v582
    %v588 = vmul.f32 %v577, %v586
    %v589 = vadd.f32 %v557, %v587
    %v590 = vadd.f32 %v558, %v588
    %591 = vset.pattern.permute.xlu0 21
    %592 = vperm.xlu0 %591, %v38
    %v593 = vpop.permute.xlu0 %592
    %v595 = vlaneseq
    %v596 = vshrl.u32 %v595, 7
    %v597 = vsub.s32 5, %v596
    %v598 = vrot.slane %v505, %v597
    %v599 = vlaneseq
    %v600 = vshrl.u32 %v599, 7
    %v601 = vsub.s32 5, %v600
    %v602 = vrot.slane %v506, %v601
    %v603 = vmul.f32 %v593, %v598
    %v604 = vmul.f32 %v593, %v602
    %v605 = vadd.f32 %v573, %v603
    %v606 = vadd.f32 %v574, %v604
    %607 = vset.pattern.permute.xlu0 22
    %608 = vperm.xlu0 %607, %v38
    %v609 = vpop.permute.xlu0 %608
    %v611 = vlaneseq
    %v612 = vshrl.u32 %v611, 7
    %v613 = vsub.s32 6, %v612
    %v614 = vrot.slane %v505, %v613
    %v615 = vlaneseq
    %v616 = vshrl.u32 %v615, 7
    %v617 = vsub.s32 6, %v616
    %v618 = vrot.slane %v506, %v617
    %v619 = vmul.f32 %v609, %v614
    %v620 = vmul.f32 %v609, %v618
    %v621 = vadd.f32 %v589, %v619
    %v622 = vadd.f32 %v590, %v620
    %623 = vset.pattern.permute.xlu0 23
    %624 = vperm.xlu0 %623, %v38
    %v625 = vpop.permute.xlu0 %624
    %v627 = vlaneseq
    %v628 = vshrl.u32 %v627, 7
    %v629 = vsub.s32 7, %v628
    %v630 = vrot.slane %v505, %v629
    %v631 = vlaneseq
    %v632 = vshrl.u32 %v631, 7
    %v633 = vsub.s32 7, %v632
    %v634 = vrot.slane %v506, %v633
    %v635 = vmul.f32 %v625, %v630
    %v636 = vmul.f32 %v625, %v634
    %v637 = vadd.f32 %v605, %v635
    %v638 = vadd.f32 %v606, %v636
    %v639 = vadd.f32 %v621, %v637
    %v640 = vadd.f32 %v622, %v638
    %641 = vst [vmem:[#allocation7] sm:$0xff] %v639
    %642 = vst [vmem:[#allocation7 + $0x8] sm:$0xff] %v640
    // Predicated region
    $region18: #{tpu_custom_call.1} parent=1 // pred_check
      _
    $region19: #{tpu_custom_call.1} parent=1 // pred_check_branch
      %644 = sbr.rel (0) target = $region21
    $region20: #{tpu_custom_call.1} parent=1 // pred_region
      %s646 = ssub.s32 256, 256
      %647 = vsyncadd [#allocation4], %s646
      %s649 = sshll.u32 [#allocation7], 4
      %s650 = int_to_ptr.vmem [resolvable:$true] %s649
      %652 = dma.vmem_to_hbm [thread:$0]  %s650, 256, %s2, [#allocation4]
    $region21: #{tpu_custom_call.1} parent=1 // pred_fallthru
      _
    // Predicated region
    $region22: #{tpu_custom_call.1} parent=1 // pred_check
      _
    $region23: #{tpu_custom_call.1} parent=1 // pred_check_branch
      %654 = sbr.rel (0) target = $region25
    $region24: #{tpu_custom_call.1} parent=1 // pred_region
      %655 = dma.done [#allocation4], 256
    $region25: #{tpu_custom_call.1} parent=1 // pred_fallthru
      _
    %656 = vsyncpa [#allocation3], 1
    %657 = vsyncpa [#allocation6], 1
    %658 = vsyncpa [#allocation4], 1

</llo_original>
